<compile_context>
chip_gen: v7x
topology: tpu7x:2x2x1
jax: 0.10.0
libtpu: 0.0.40
codegen_flags: <defaults>
</compile_context>

<pallas_src>
import math

import jax
import jax.numpy as jnp
from jax.experimental import pallas as pl
from jax.experimental.pallas import tpu as pltpu


def _elu(x):
    # F.elu with alpha=1: x if x > 0 else exp(x) - 1
    return jnp.where(x > 0, x, jnp.expm1(x))


def _round_up(x, m):
    return ((x + m - 1) // m) * m


# --------------------------------------------------------------- kernels
def support_kernel(h_ref, w_ref, s_ref):
    # support = h @ W  (bf16 operands, f32 MXU accumulation, bf16 result for pass 2)
    s_ref[...] = jnp.dot(
        h_ref[...], w_ref[...], preferred_element_type=jnp.float32
    ).astype(s_ref.dtype)


def aggregate_kernel(adj_ref, s_ref, b_ref, o_ref, acc_ref):
    # out[dst_tile] = elu( sum_k adj[dst_tile, src_tile_k] @ support[src_tile_k] + b )
    k = pl.program_id(1)

    @pl.when(k == 0)
    def _():
        acc_ref[...] = jnp.zeros_like(acc_ref)

    acc_ref[...] += jnp.dot(
        adj_ref[...], s_ref[...], preferred_element_type=jnp.float32
    )

    @pl.when(k == pl.num_programs(1) - 1)
    def _():
        o_ref[...] = _elu(acc_ref[...] + b_ref[...]).astype(o_ref.dtype)


# --------------------------------------------------------------- wrapper
def graph_convolution(inputs, adj, weight, bias=None):
    """elu(adj @ (inputs @ weight) + bias), matching GraphConvolution.forward."""
    N, Fin = inputs.shape
    Fout = weight.shape[1]

    f32 = jnp.float32
    bf16 = jnp.bfloat16

    # Lane-dense / MXU-wide feature width.
    Fp = _round_up(Fout, 128)

    # src/K tile must be a multiple of 128 (lane dim of the adj block);
    # dst tile a multiple of 8.  N is zero-padded to a multiple of the tiles.
    if N <= 128:
        tile_k = 128
    elif N <= 256:
        tile_k = 256
    else:
        tile_k = 512
    Np = _round_up(N, tile_k)
    tile_m = min(256, Np)

    # Zero-padded, bf16-cast operands (binary adjacency is exact in bf16;
    # h/W lose ~3 decimal digits but matmuls accumulate in f32).
    hp = jnp.zeros((Np, Fin), bf16).at[:N, :].set(inputs.astype(bf16))
    wp = jnp.zeros((Fin, Fp), bf16).at[:, :Fout].set(weight.astype(bf16))
    adjp = jnp.zeros((Np, Np), bf16).at[:N, :N].set(adj.astype(bf16))
    bp = jnp.zeros((1, Fp), f32)
    if bias is not None:
        bp = bp.at[0, :Fout].set(bias.astype(f32))

    # ---- pass 1: support = h @ W  (row-tiled; W stays resident) -------------
    support = pl.pallas_call(
        support_kernel,
        out_shape=jax.ShapeDtypeStruct((Np, Fp), bf16),
        grid=(Np // tile_k,),
        in_specs=[
            pl.BlockSpec((tile_k, Fin), lambda i: (i, 0)),
            pl.BlockSpec((Fin, Fp), lambda i: (0, 0)),
        ],
        out_specs=pl.BlockSpec((tile_k, Fp), lambda i: (i, 0)),
        compiler_params=pltpu.CompilerParams(
            dimension_semantics=("parallel",)),
        cost_estimate=pl.CostEstimate(
            flops=2 * Np * Fin * Fp,
            transcendentals=0,
            bytes_accessed=2 * (Np * Fin + Fin * Fp + Np * Fp)),
    )(hp, wp)

    # ---- pass 2: out = elu(adj @ support + b)  (dst tiles x src/K tiles) ----
    vmem_bytes = (
        2 * tile_m * tile_k * 2      # adj blocks, double-buffered, bf16
        + 2 * tile_k * Fp * 2        # support blocks
        + 2 * tile_m * Fp * 4        # output blocks
        + tile_m * Fp * 4            # f32 accumulator scratch
        + 2 * Fp * 4                 # bias
    ) * 2 + (2 << 20)                # headroom for internal scratch
    vmem_bytes = max(int(vmem_bytes), 16 * 1024 * 1024)

    out = pl.pallas_call(
        aggregate_kernel,
        out_shape=jax.ShapeDtypeStruct((Np, Fp), f32),
        grid=(Np // tile_m, Np // tile_k),
        in_specs=[
            pl.BlockSpec((tile_m, tile_k), lambda i, k: (i, k)),
            pl.BlockSpec((tile_k, Fp), lambda i, k: (k, 0)),
            pl.BlockSpec((1, Fp), lambda i, k: (0, 0)),
        ],
        out_specs=pl.BlockSpec((tile_m, Fp), lambda i, k: (i, 0)),
        scratch_shapes=[pltpu.VMEM((tile_m, Fp), f32)],
        compiler_params=pltpu.CompilerParams(
            dimension_semantics=("parallel", "arbitrary"),
            vmem_limit_bytes=vmem_bytes),
        cost_estimate=pl.CostEstimate(
            flops=2 * Np * Np * Fp,
            transcendentals=Np * Fp,
            bytes_accessed=2 * Np * Np + 2 * Np * Fp + 4 * Np * Fp),
    )(adjp, support, bp)

    return out[:N, :Fout]


# --------------------------------------------------------------- reference
def reference_bf16(inputs, adj, weight, bias):
    """Same math as the kernel (bf16 operands, f32 accumulation) in plain JAX."""
    bf16 = jnp.bfloat16
    support = jnp.dot(inputs.astype(bf16), weight.astype(bf16),
                      preferred_element_type=jnp.float32).astype(bf16)
    out = jnp.dot(adj.astype(bf16), support,
                  preferred_element_type=jnp.float32) + bias
    return _elu(out)


# --------------------------------------------------------------- demo
def init_params(key, in_features, out_features):
    stdv = 1.0 / math.sqrt(out_features)
    kw, kb = jax.random.split(key)
    weight = jax.random.uniform(kw, (in_features, out_features), jnp.float32,
                                -stdv, stdv)
    bias = jax.random.uniform(kb, (out_features,), jnp.float32, -stdv, stdv)
    return weight, bias


def make_adj(key, n):
    a = (jax.random.uniform(key, (n, n)) > 0.5).astype(jnp.float32)
    return jnp.maximum(a, jnp.eye(n, dtype=jnp.float32))  # self-loops


if __name__ == "__main__":
    N = 600           # nodes (non-multiple of the tiles -> exercises padding)
    in_features = 48
    out_features = 64

    key = jax.random.PRNGKey(0)
    k_h, k_adj, k_p = jax.random.split(key, 3)

    h = jax.random.normal(k_h, (N, in_features), jnp.float32)
    adj = make_adj(k_adj, N)
    weight, bias = init_params(k_p, in_features, out_features)

    out = graph_convolution(h, adj, weight, bias)
    out = jax.block_until_ready(out)
    assert out.shape == (N, out_features), out.shape

    ref = reference_bf16(h, adj, weight, bias)
    assert bool(jnp.allclose(out, ref, rtol=2e-2, atol=2e-2)), (
        float(jnp.max(jnp.abs(out - ref))))

    print("KERNEL_OK")
</pallas_src>

<mosaic_0001>
module attributes {stable_mosaic.version = 11 : i64} {
  func.func @support_kernel(%arg0: i32, %arg1: memref<512x48xbf16, #tpu.memory_space<vmem>>, %arg2: memref<48x128xbf16, #tpu.memory_space<vmem>>, %arg3: memref<512x128xbf16, #tpu.memory_space<vmem>>) attributes {dimension_semantics = [#tpu.dimension_semantics<parallel>], iteration_bounds = array<i64: 2>, scalar_prefetch = 0 : i64, scratch_operands = 0 : i64, tpu.core_type = #tpu.core_type<tc>, window_params = [{transform_indices = @transform_0, window_bounds = array<i64: 512, 48>}, {pipeline_mode = #tpu.pipeline_mode<synchronous>, transform_indices = @transform_1, window_bounds = array<i64: 48, 128>}, {transform_indices = @transform_2, window_bounds = array<i64: 512, 128>}]} {
    %c0 = arith.constant 0 : index
    %c0_0 = arith.constant 0 : index
    %0 = vector.load %arg1[%c0, %c0_0] : memref<512x48xbf16, #tpu.memory_space<vmem>>, vector<512x48xbf16>
    %c0_1 = arith.constant 0 : index
    %c0_2 = arith.constant 0 : index
    %1 = vector.load %arg2[%c0_1, %c0_2] : memref<48x128xbf16, #tpu.memory_space<vmem>>, vector<48x128xbf16>
    %cst = arith.constant dense<0.000000e+00> : vector<512x128xf32>
    %2 = tpu.matmul %0, %1, %cst {dimension_numbers = #tpu.dot_dimension_numbers<[1], [0], [0], [1], [0, 0, 1, 1], [], []>} : vector<512x48xbf16>, vector<48x128xbf16>, vector<512x128xf32> -> vector<512x128xf32>
    %3 = arith.truncf %2 : vector<512x128xf32> to vector<512x128xbf16>
    %c0_3 = arith.constant 0 : index
    %c0_4 = arith.constant 0 : index
    %4 = vector.load %arg3[%c0_3, %c0_4] : memref<512x128xbf16, #tpu.memory_space<vmem>>, vector<512x128xbf16>
    tpu.vector_store %arg3[%c0_3, %c0_4], %3 {strides = array<i32>} : memref<512x128xbf16, #tpu.memory_space<vmem>>, vector<512x128xbf16>,
    return
  }
  func.func @transform_0(%arg0: i32) -> (i32, i32) {
    %c0_i32 = arith.constant 0 : i32
    %c0_i32_0 = arith.constant 0 : i32
    return %arg0, %c0_i32 : i32, i32
  }
  func.func @transform_1(%arg0: i32) -> (i32, i32) {
    %c0_i32 = arith.constant 0 : i32
    %c0_i32_0 = arith.constant 0 : i32
    %c0_i32_1 = arith.constant 0 : i32
    return %c0_i32, %c0_i32_0 : i32, i32
  }
  func.func @transform_2(%arg0: i32) -> (i32, i32) {
    %c0_i32 = arith.constant 0 : i32
    %c0_i32_0 = arith.constant 0 : i32
    return %arg0, %c0_i32 : i32, i32
  }
}

</mosaic_0001>

<llo_original>
// kernel: tpu_custom_call.1
$region0: #{tpu_custom_call.1}
  #allocation0 [shape = 'u32[]', space=smem, size = 0x4, offset = 0x4, fixed_abs, tag = 'smem constant byte address 0x4 - core index']
  #allocation1 [shape = 'u32[144,128]{1,0:T(1,128)}', space=vmem, size = 0x12000, scoped, tag = 'internal scratch']
  %s0 = inlined_call_operand.vmem [shape: bf16[1024,48], index: 0, kind: input, shape index: {}]
  %s1 = inlined_call_operand.vmem [shape: bf16[48,128], index: 1, kind: input, shape index: {}]
  %s2 = inlined_call_operand.hbm [shape: bf16[1024,128], index: 2, kind: output, shape index: {}]
  %s3 = sld [smem:[#allocation0]]
  $region41: #{tpu_custom_call.1} parent=0
    _
  %s5 = ssub.s32 1, %s3
  %s6 = scalar_select 0, %s5, %s3
  $region1: #{tpu_custom_call.1} parent=0
    #allocation2 [shape = 'u8[262144]{0}', space=vmem, size = 0x40000, scoped, tag = 'output window, operand 0']
    #allocation3 [shape = 's32[2]{0}', space=sflag, size = 0x8, scoped, tag = 'scoped memory for tpu_custom_call.1']
    %7 = vsyncpa [#allocation3], 0
    %s8 = scalar_lea.sflag [#allocation3], 1
    %9 = vsyncpa %s8, 0
    loop: start=0, step=1, limit=4
    $region2: #{tpu_custom_call.1} parent=1 // loop_pre_header
      _
    $region3: #{tpu_custom_call.1} parent=1 // loop_header
      %s11 = sphi 0, %s15
      %p12 = scmp.ge.s32.totalorder %s11, 4
      %s21 = sphi 0, %s23
      %s24 = sphi 0, %s21
      %s25 = sphi 0, %s24
      %s41 = sphi 0, %s25
      %s45 = sphi 0, %s45
      %s47 = sphi 0, %s45
      %s48 = sphi 0, %s47
      %s62 = sphi 0, %s48
      %s68 = sphi 0, %s70
      %s71 = sphi 0, %s68
      %s72 = sphi 0, %s71
      %s88 = sphi 0, %s72
    $region4: #{tpu_custom_call.1} parent=1 // loop_header_branch
      %14 = sbr.rel (%p12) target = $region8
    $region5: #{tpu_custom_call.1} parent=1 // loop_body
      %s16 = ssub.s32 %s11, 1
      %s17 = ssub.s32 %s11, 2
      %s18 = sadd.s32 %s11, 1
      %s19 = ssub.s32 %s11, %s18
      %p20 = scmp.eq.s32.totalorder %s19, 0
      %s22 = sadd.s32 %s21, 1
      %s23 = scalar_select %p20, %s21, %s22
      %p26 = pneg %p20
      %p27 = scmp.eq.s32.totalorder %s11, 1
      %p28 = por %p26, %p27
      %p29 = scmp.ne.s32.totalorder %s21, %s24
      %p30 = scmp.eq.s32.totalorder %s11, 0
      %p31 = por %p29, %p30
      %p32 = scmp.ne.s32.totalorder %s21, %s24
      %p33 = scmp.eq.s32.totalorder %s16, 1
      %p34 = por %p32, %p33
      %p35 = scmp.ne.s32.totalorder %s24, %s25
      %p36 = scmp.eq.s32.totalorder %s16, 0
      %p37 = por %p35, %p36
      %p38 = scmp.ne.s32.totalorder %s24, %s25
      %p39 = scmp.eq.s32.totalorder %s17, 1
      %p40 = por %p38, %p39
      %p42 = scmp.ne.s32.totalorder %s25, %s41
      %p43 = scmp.eq.s32.totalorder %s17, 0
      %p44 = por %p42, %p43
      %s46 = sadd.s32 %s45, 1
      %p49 = scmp.eq.s32.totalorder %s11, 1
      %p50 = scmp.ne.s32.totalorder %s45, %s47
      %p51 = scmp.eq.s32.totalorder %s11, 0
      %p52 = por %p50, %p51
      %p53 = scmp.ne.s32.totalorder %s45, %s47
      %p54 = scmp.eq.s32.totalorder %s16, 1
      %p55 = por %p53, %p54
      %p56 = scmp.ne.s32.totalorder %s47, %s48
      %p57 = scmp.eq.s32.totalorder %s16, 0
      %p58 = por %p56, %p57
      %p59 = scmp.ne.s32.totalorder %s47, %s48
      %p60 = scmp.eq.s32.totalorder %s17, 1
      %p61 = por %p59, %p60
      %p63 = scmp.ne.s32.totalorder %s48, %s62
      %p64 = scmp.eq.s32.totalorder %s17, 0
      %p65 = por %p63, %p64
      %s66 = ssub.s32 %s11, %s18
      %p67 = scmp.eq.s32.totalorder %s66, 0
      %s69 = sadd.s32 %s68, 1
      %s70 = scalar_select %p67, %s68, %s69
      %p73 = pneg %p67
      %p74 = scmp.eq.s32.totalorder %s11, 1
      %p75 = por %p73, %p74
      %p76 = scmp.ne.s32.totalorder %s68, %s71
      %p77 = scmp.eq.s32.totalorder %s11, 0
      %p78 = por %p76, %p77
      %p79 = scmp.ne.s32.totalorder %s68, %s71
      %p80 = scmp.eq.s32.totalorder %s16, 1
      %p81 = por %p79, %p80
      %p82 = scmp.ne.s32.totalorder %s71, %s72
      %p83 = scmp.eq.s32.totalorder %s16, 0
      %p84 = por %p82, %p83
      %p85 = scmp.ne.s32.totalorder %s71, %s72
      %p86 = scmp.eq.s32.totalorder %s17, 1
      %p87 = por %p85, %p86
      %p89 = scmp.ne.s32.totalorder %s72, %s88
      %p90 = scmp.eq.s32.totalorder %s17, 0
      %p91 = por %p89, %p90
      %p92 = scmp.le.s32.totalorder 1, %s11
      %p93 = scmp.lt.s32.totalorder %s11, 3
      %p94 = pnand %p92, %p93
      %p95 = pneg %p94
      // Predicated region
      $region9: #{tpu_custom_call.1} parent=5 // pred_check
        _
      $region10: #{tpu_custom_call.1} parent=5 // pred_check_branch
        %97 = sbr.rel (%p94) target = $region12
      $region11: #{tpu_custom_call.1} parent=5 // pred_region
        %s98 = ssub.s32 %s11, 1
        // Predicated region
        $region13: #{tpu_custom_call.1} parent=11 // pred_check
          %p99 = pneg %p58
        $region14: #{tpu_custom_call.1} parent=11 // pred_check_branch
          %101 = sbr.rel (%p99) target = $region16
        $region15: #{tpu_custom_call.1} parent=11 // pred_region
          _
        $region16: #{tpu_custom_call.1} parent=11 // pred_fallthru
          _
      $region12: #{tpu_custom_call.1} parent=5 // pred_fallthru
        _
      %p102 = scmp.lt.s32.totalorder %s11, 2
      // Predicated region
      $region17: #{tpu_custom_call.1} parent=5 // pred_check
        %p103 = pneg %p102
      $region18: #{tpu_custom_call.1} parent=5 // pred_check_branch
        %105 = sbr.rel (%p103) target = $region20
      $region19: #{tpu_custom_call.1} parent=5 // pred_region
        // Predicated region
        $region21: #{tpu_custom_call.1} parent=19 // pred_check
          %p106 = pneg %p31
        $region22: #{tpu_custom_call.1} parent=19 // pred_check_branch
          %108 = sbr.rel (%p106) target = $region24
        $region23: #{tpu_custom_call.1} parent=19 // pred_region
          %s109 = smul.u32 64, %s11
          %p110 = scmp.lt.s32.totalorder %s109, 127
          %s111 = scalar_select %p110, %s109, 127
          %s112 = smul.addr %s111, 4
          %s113 = scalar_lea.vmem %s0, %s112
          %s114 = smul.u32 64, %s11
        $region24: #{tpu_custom_call.1} parent=19 // pred_fallthru
          _
      $region20: #{tpu_custom_call.1} parent=5 // pred_fallthru
        _
      %p115 = scmp.le.s32.totalorder 1, %s11
      %p116 = scmp.lt.s32.totalorder %s11, 3
      %p117 = pnand %p115, %p116
      %p118 = pneg %p117
      // Predicated region
      $region25: #{tpu_custom_call.1} parent=5 // pred_check
        _
      $region26: #{tpu_custom_call.1} parent=5 // pred_check_branch
        %120 = sbr.rel (%p117) target = $region28
      $region27: #{tpu_custom_call.1} parent=5 // pred_region
        %s121 = ssub.s32 %s11, 1
        %s122 = smul.u32 64, %s16
        %p123 = scmp.lt.s32.totalorder %s122, 127
        %s124 = scalar_select %p123, %s122, 127
        %s125 = smul.addr %s124, 4
        %s126 = scalar_lea.vmem %s0, %s125
        %p127 = pneg %p37
        %p128 = pneg %p34
        %p129 = pneg %p58
        %p130 = pneg %p55
        %p131 = pneg %p84
        %p132 = pneg %p81
        %s133 = sand.u32 %s71, 1
        %s134 = scalar_lea.sflag [#allocation3], %s133
        %s135 = sand.u32 %s71, 1
        %s136 = smul.addr %s135, 256
        %s137 = scalar_lea.vmem [#allocation2], %s136
        %s138 = smul.u32 64, %s16
        %p139 = scmp.lt.s32.totalorder %s138, 127
        %s140 = scalar_select %p139, %s138, 127
        %s141 = smul.addr %s140, 4
        %s142 = scalar_lea.vmem %s0, %s141
        %s143 = smul.u32 64, %s16
        %s144 = smul.u32 64, %s16
        %v146 = vld [vmem:[%s142] sm:$0xf]
        %v147 = vld [vmem:[%s142 + $0x4] sm:$0xf]
        %v148 = vld [vmem:[%s142 + $0x8] sm:$0xf]
        %v149 = vld [vmem:[%s142 + $0xc] sm:$0xf]
        %v150 = vld [vmem:[%s142 + $0x10] sm:$0xf]
        %v151 = vld [vmem:[%s142 + $0x14] sm:$0xf]
        %v152 = vld [vmem:[%s142 + $0x18] sm:$0xf]
        %v153 = vld [vmem:[%s142 + $0x1c] sm:$0xf]
        %v154 = vld [vmem:[%s142 + $0x20] sm:$0xf]
        %v155 = vld [vmem:[%s142 + $0x24] sm:$0xf]
        %v156 = vld [vmem:[%s142 + $0x28] sm:$0xf]
        %v157 = vld [vmem:[%s142 + $0x2c] sm:$0xf]
        %v158 = vld [vmem:[%s142 + $0x30] sm:$0xf]
        %v159 = vld [vmem:[%s142 + $0x34] sm:$0xf]
        %v160 = vld [vmem:[%s142 + $0x38] sm:$0xf]
        %v161 = vld [vmem:[%s142 + $0x3c] sm:$0xf]
        %v162 = vld [vmem:[%s142 + $0x40] sm:$0xf]
        %v163 = vld [vmem:[%s142 + $0x44] sm:$0xf]
        %v164 = vld [vmem:[%s142 + $0x48] sm:$0xf]
        %v165 = vld [vmem:[%s142 + $0x4c] sm:$0xf]
        %v166 = vld [vmem:[%s142 + $0x50] sm:$0xf]
        %v167 = vld [vmem:[%s142 + $0x54] sm:$0xf]
        %v168 = vld [vmem:[%s142 + $0x58] sm:$0xf]
        %v169 = vld [vmem:[%s142 + $0x5c] sm:$0xf]
        %v170 = vld [vmem:[%s142 + $0x60] sm:$0xf]
        %v171 = vld [vmem:[%s142 + $0x64] sm:$0xf]
        %v172 = vld [vmem:[%s142 + $0x68] sm:$0xf]
        %v173 = vld [vmem:[%s142 + $0x6c] sm:$0xf]
        %v174 = vld [vmem:[%s142 + $0x70] sm:$0xf]
        %v175 = vld [vmem:[%s142 + $0x74] sm:$0xf]
        %v176 = vld [vmem:[%s142 + $0x78] sm:$0xf]
        %v177 = vld [vmem:[%s142 + $0x7c] sm:$0xf]
        %v178 = vld [vmem:[%s142 + $0x80] sm:$0xf]
        %v179 = vld [vmem:[%s142 + $0x84] sm:$0xf]
        %v180 = vld [vmem:[%s142 + $0x88] sm:$0xf]
        %v181 = vld [vmem:[%s142 + $0x8c] sm:$0xf]
        %v182 = vld [vmem:[%s142 + $0x90] sm:$0xf]
        %v183 = vld [vmem:[%s142 + $0x94] sm:$0xf]
        %v184 = vld [vmem:[%s142 + $0x98] sm:$0xf]
        %v185 = vld [vmem:[%s142 + $0x9c] sm:$0xf]
        %v186 = vld [vmem:[%s142 + $0xa0] sm:$0xf]
        %v187 = vld [vmem:[%s142 + $0xa4] sm:$0xf]
        %v188 = vld [vmem:[%s142 + $0xa8] sm:$0xf]
        %v189 = vld [vmem:[%s142 + $0xac] sm:$0xf]
        %v190 = vld [vmem:[%s142 + $0xb0] sm:$0xf]
        %v191 = vld [vmem:[%s142 + $0xb4] sm:$0xf]
        %v192 = vld [vmem:[%s142 + $0xb8] sm:$0xf]
        %v193 = vld [vmem:[%s142 + $0xbc] sm:$0xf]
        %v194 = vld [vmem:[%s142 + $0xc0] sm:$0xf]
        %v195 = vld [vmem:[%s142 + $0xc4] sm:$0xf]
        %v196 = vld [vmem:[%s142 + $0xc8] sm:$0xf]
        %v197 = vld [vmem:[%s142 + $0xcc] sm:$0xf]
        %v198 = vld [vmem:[%s142 + $0xd0] sm:$0xf]
        %v199 = vld [vmem:[%s142 + $0xd4] sm:$0xf]
        %v200 = vld [vmem:[%s142 + $0xd8] sm:$0xf]
        %v201 = vld [vmem:[%s142 + $0xdc] sm:$0xf]
        %v202 = vld [vmem:[%s142 + $0xe0] sm:$0xf]
        %v203 = vld [vmem:[%s142 + $0xe4] sm:$0xf]
        %v204 = vld [vmem:[%s142 + $0xe8] sm:$0xf]
        %v205 = vld [vmem:[%s142 + $0xec] sm:$0xf]
        %v206 = vld [vmem:[%s142 + $0xf0] sm:$0xf]
        %v207 = vld [vmem:[%s142 + $0xf4] sm:$0xf]
        %v208 = vld [vmem:[%s142 + $0xf8] sm:$0xf]
        %v209 = vld [vmem:[%s142 + $0xfc] sm:$0xf]
        %v210 = vld [vmem:[%s1] sm:$0xf]
        %v211 = vld [vmem:[%s1 + $0x4] sm:$0xf]
        %v212 = vld [vmem:[%s1 + $0x8] sm:$0xf]
        %v213 = vld [vmem:[%s1 + $0xc] sm:$0xf]
        %v214 = vld [vmem:[%s1 + $0x10] sm:$0xf]
        %v215 = vld [vmem:[%s1 + $0x14] sm:$0xf]
        %v280 = vunpack.c.l.b16 %v146
        %v281 = vunpack.c.l.b16 %v147
        %v282 = vunpack.c.l.b16 %v148
        %v283 = vunpack.c.l.b16 %v149
        %v284 = vunpack.c.l.b16 %v150
        %v285 = vunpack.c.l.b16 %v151
        %v286 = vunpack.c.l.b16 %v152
        %v287 = vunpack.c.l.b16 %v153
        %v288 = vunpack.c.l.b16 %v154
        %v289 = vunpack.c.l.b16 %v155
        %v290 = vunpack.c.l.b16 %v156
        %v291 = vunpack.c.l.b16 %v157
        %v292 = vunpack.c.l.b16 %v158
        %v293 = vunpack.c.l.b16 %v159
        %v294 = vunpack.c.l.b16 %v160
        %v295 = vunpack.c.l.b16 %v161
        %v296 = vunpack.c.l.b16 %v162
        %v297 = vunpack.c.l.b16 %v163
        %v298 = vunpack.c.l.b16 %v164
        %v299 = vunpack.c.l.b16 %v165
        %v300 = vunpack.c.l.b16 %v166
        %v301 = vunpack.c.l.b16 %v167
        %v302 = vunpack.c.l.b16 %v168
        %v303 = vunpack.c.l.b16 %v169
        %v304 = vunpack.c.l.b16 %v170
        %v305 = vunpack.c.l.b16 %v171
        %v306 = vunpack.c.l.b16 %v172
        %v307 = vunpack.c.l.b16 %v173
        %v308 = vunpack.c.l.b16 %v174
        %v309 = vunpack.c.l.b16 %v175
        %v310 = vunpack.c.l.b16 %v176
        %v311 = vunpack.c.l.b16 %v177
        %v312 = vunpack.c.l.b16 %v178
        %v313 = vunpack.c.l.b16 %v179
        %v314 = vunpack.c.l.b16 %v180
        %v315 = vunpack.c.l.b16 %v181
        %v316 = vunpack.c.l.b16 %v182
        %v317 = vunpack.c.l.b16 %v183
        %v318 = vunpack.c.l.b16 %v184
        %v319 = vunpack.c.l.b16 %v185
        %v320 = vunpack.c.l.b16 %v186
        %v321 = vunpack.c.l.b16 %v187
        %v322 = vunpack.c.l.b16 %v188
        %v323 = vunpack.c.l.b16 %v189
        %v324 = vunpack.c.l.b16 %v190
        %v325 = vunpack.c.l.b16 %v191
        %v326 = vunpack.c.l.b16 %v192
        %v327 = vunpack.c.l.b16 %v193
        %v328 = vunpack.c.l.b16 %v194
        %v329 = vunpack.c.l.b16 %v195
        %v330 = vunpack.c.l.b16 %v196
        %v331 = vunpack.c.l.b16 %v197
        %v332 = vunpack.c.l.b16 %v198
        %v333 = vunpack.c.l.b16 %v199
        %v334 = vunpack.c.l.b16 %v200
        %v335 = vunpack.c.l.b16 %v201
        %v336 = vunpack.c.l.b16 %v202
        %v337 = vunpack.c.l.b16 %v203
        %v338 = vunpack.c.l.b16 %v204
        %v339 = vunpack.c.l.b16 %v205
        %v340 = vunpack.c.l.b16 %v206
        %v341 = vunpack.c.l.b16 %v207
        %v342 = vunpack.c.l.b16 %v208
        %v343 = vunpack.c.l.b16 %v209
        %v344 = vpack.c.b16 %v281, %v280
        %v345 = vpack.c.b16 %v283, %v282
        %v346 = vpack.c.b16 %v285, %v284
        %v347 = vpack.c.b16 %v287, %v286
        %v348 = vpack.c.b16 %v289, %v288
        %v349 = vpack.c.b16 %v291, %v290
        %v350 = vpack.c.b16 %v293, %v292
        %v351 = vpack.c.b16 %v295, %v294
        %v352 = vpack.c.b16 %v297, %v296
        %v353 = vpack.c.b16 %v299, %v298
        %v354 = vpack.c.b16 %v301, %v300
        %v355 = vpack.c.b16 %v303, %v302
        %v356 = vpack.c.b16 %v305, %v304
        %v357 = vpack.c.b16 %v307, %v306
        %v358 = vpack.c.b16 %v309, %v308
        %v359 = vpack.c.b16 %v311, %v310
        %v360 = vpack.c.b16 %v313, %v312
        %v361 = vpack.c.b16 %v315, %v314
        %v362 = vpack.c.b16 %v317, %v316
        %v363 = vpack.c.b16 %v319, %v318
        %v364 = vpack.c.b16 %v321, %v320
        %v365 = vpack.c.b16 %v323, %v322
        %v366 = vpack.c.b16 %v325, %v324
        %v367 = vpack.c.b16 %v327, %v326
        %v368 = vpack.c.b16 %v329, %v328
        %v369 = vpack.c.b16 %v331, %v330
        %v370 = vpack.c.b16 %v333, %v332
        %v371 = vpack.c.b16 %v335, %v334
        %v372 = vpack.c.b16 %v337, %v336
        %v373 = vpack.c.b16 %v339, %v338
        %v374 = vpack.c.b16 %v341, %v340
        %v375 = vpack.c.b16 %v343, %v342
        %v382 = vunpack.c.l.b16 %v210
        %v383 = vunpack.c.l.b16 %v211
        %v384 = vunpack.c.l.b16 %v212
        %v385 = vunpack.c.l.b16 %v213
        %v386 = vunpack.c.l.b16 %v214
        %v387 = vunpack.c.l.b16 %v215
        %v388 = vpack.c.b16 %v383, %v382
        %v389 = vpack.c.b16 %v385, %v384
        %v390 = vpack.c.b16 %v387, %v386
        %vm394 = vcmask 392192
        %v396 = vsel %vm394, %v344, 0
        %v399 = vsel %vm394, %v345, 0
        %v402 = vsel %vm394, %v346, 0
        %v405 = vsel %vm394, %v347, 0
        %v408 = vsel %vm394, %v348, 0
        %v411 = vsel %vm394, %v349, 0
        %v414 = vsel %vm394, %v350, 0
        %v417 = vsel %vm394, %v351, 0
        %v420 = vsel %vm394, %v352, 0
        %v423 = vsel %vm394, %v353, 0
        %v426 = vsel %vm394, %v354, 0
        %v429 = vsel %vm394, %v355, 0
        %v432 = vsel %vm394, %v356, 0
        %v435 = vsel %vm394, %v357, 0
        %v438 = vsel %vm394, %v358, 0
        %v441 = vsel %vm394, %v359, 0
        %v444 = vsel %vm394, %v360, 0
        %v447 = vsel %vm394, %v361, 0
        %v450 = vsel %vm394, %v362, 0
        %v453 = vsel %vm394, %v363, 0
        %v456 = vsel %vm394, %v364, 0
        %v459 = vsel %vm394, %v365, 0
        %v462 = vsel %vm394, %v366, 0
        %v465 = vsel %vm394, %v367, 0
        %v468 = vsel %vm394, %v368, 0
        %v471 = vsel %vm394, %v369, 0
        %v474 = vsel %vm394, %v370, 0
        %v477 = vsel %vm394, %v371, 0
        %v480 = vsel %vm394, %v372, 0
        %v483 = vsel %vm394, %v373, 0
        %v486 = vsel %vm394, %v374, 0
        %v489 = vsel %vm394, %v375, 0
        %491 = vmatprep.subr.bf16.mxu0 0
        %492 = vmatpush1.bf16.msra.mxu0 %v388
        %493 = vmatprep.subr.bf16.mxu0 0
        %494 = vmatpush1.bf16.msra.mxu0 %v389
        %495 = vmatprep.subr.bf16.mxu0 0
        %496 = vmatpush1.bf16.msra.mxu0 %v390
        %497 = vmatprep.subr.bf16.mxu0 0
        %498 = vmatpush1.bf16.msra.mxu0 0
        %499 = vmatprep.subr.bf16.mxu0 0
        %500 = vmatpush1.bf16.msra.mxu0 0
        %501 = vmatprep.subr.bf16.mxu0 0
        %502 = vmatpush1.bf16.msra.mxu0 0
        %503 = vmatprep.subr.bf16.mxu0 0
        %504 = vmatpush1.bf16.msra.mxu0 0
        %505 = vmatprep.subr.bf16.mxu0 0
        %506 = vmatpush1.bf16.msra.mxu0 0
        %507 = vmatprep.subr.bf16.mxu0 0
        %508 = vmatpush1.bf16.msra.mxu0 0
        %509 = vmatprep.subr.bf16.mxu0 0
        %510 = vmatpush1.bf16.msra.mxu0 0
        %511 = vmatprep.subr.bf16.mxu0 0
        %512 = vmatpush1.bf16.msra.mxu0 0
        %513 = vmatprep.subr.bf16.mxu0 0
        %514 = vmatpush1.bf16.msra.mxu0 0
        %515 = vmatprep.subr.bf16.mxu0 0
        %516 = vmatpush1.bf16.msra.mxu0 0
        %517 = vmatprep.subr.bf16.mxu0 0
        %518 = vmatpush1.bf16.msra.mxu0 0
        %519 = vmatprep.subr.bf16.mxu0 0
        %520 = vmatpush1.bf16.msra.mxu0 0
        %521 = vmatprep.subr.bf16.mxu0 0
        %522 = vmatpush1.bf16.msra.mxu0 0
        %523 = vmatprep.mubr.bf16.mxu0 0
        %524 = vmatmul.mubr.bf16.gmra.mrb[0].mxu0 %v396
        %v525 = vpop.f32.mrb[0].mxu0
        %v526 = vadd.f32 0.0, %v525
        %v527 = vpop.f32.mrb[0].mxu0
        %v528 = vpop.f32.mrb[0].mxu0
        %v529 = vadd.f32 0.0, %v528
        %v530 = vpop.f32.mrb[0].mxu0
        %531 = vmatprep.mubr.bf16.mxu0 0
        %532 = vmatmul.mubr.bf16.gmra.mrb[0].mxu0 %v399
        %v533 = vpop.f32.mrb[0].mxu0
        %v534 = vadd.f32 0.0, %v533
        %v535 = vpop.f32.mrb[0].mxu0
        %v536 = vpop.f32.mrb[0].mxu0
        %v537 = vadd.f32 0.0, %v536
        %v538 = vpop.f32.mrb[0].mxu0
        %539 = vmatprep.mubr.bf16.mxu0 0
        %540 = vmatmul.mubr.bf16.gmra.mrb[0].mxu0 %v402
        %v541 = vpop.f32.mrb[0].mxu0
        %v542 = vadd.f32 0.0, %v541
        %v543 = vpop.f32.mrb[0].mxu0
        %v544 = vpop.f32.mrb[0].mxu0
        %v545 = vadd.f32 0.0, %v544
        %v546 = vpop.f32.mrb[0].mxu0
        %547 = vmatprep.mubr.bf16.mxu0 0
        %548 = vmatmul.mubr.bf16.gmra.mrb[0].mxu0 %v405
        %v549 = vpop.f32.mrb[0].mxu0
        %v550 = vadd.f32 0.0, %v549
        %v551 = vpop.f32.mrb[0].mxu0
        %v552 = vpop.f32.mrb[0].mxu0
        %v553 = vadd.f32 0.0, %v552
        %v554 = vpop.f32.mrb[0].mxu0
        %555 = vmatprep.mubr.bf16.mxu0 0
        %556 = vmatmul.mubr.bf16.gmra.mrb[0].mxu0 %v408
        %v557 = vpop.f32.mrb[0].mxu0
        %v558 = vadd.f32 0.0, %v557
        %v559 = vpop.f32.mrb[0].mxu0
        %v560 = vpop.f32.mrb[0].mxu0
        %v561 = vadd.f32 0.0, %v560
        %v562 = vpop.f32.mrb[0].mxu0
        %563 = vmatprep.mubr.bf16.mxu0 0
        %564 = vmatmul.mubr.bf16.gmra.mrb[0].mxu0 %v411
        %v565 = vpop.f32.mrb[0].mxu0
        %v566 = vadd.f32 0.0, %v565
        %v567 = vpop.f32.mrb[0].mxu0
        %v568 = vpop.f32.mrb[0].mxu0
        %v569 = vadd.f32 0.0, %v568
        %v570 = vpop.f32.mrb[0].mxu0
        %571 = vmatprep.mubr.bf16.mxu0 0
        %572 = vmatmul.mubr.bf16.gmra.mrb[0].mxu0 %v414
        %v573 = vpop.f32.mrb[0].mxu0
        %v574 = vadd.f32 0.0, %v573
        %v575 = vpop.f32.mrb[0].mxu0
        %v576 = vpop.f32.mrb[0].mxu0
        %v577 = vadd.f32 0.0, %v576
        %v578 = vpop.f32.mrb[0].mxu0
        %579 = vmatprep.mubr.bf16.mxu0 0
        %580 = vmatmul.mubr.bf16.gmra.mrb[0].mxu0 %v417
        %v581 = vpop.f32.mrb[0].mxu0
        %v582 = vadd.f32 0.0, %v581
        %v583 = vpop.f32.mrb[0].mxu0
        %v584 = vpop.f32.mrb[0].mxu0
        %v585 = vadd.f32 0.0, %v584
        %v586 = vpop.f32.mrb[0].mxu0
        %587 = vmatprep.mubr.bf16.mxu0 0
        %588 = vmatmul.mubr.bf16.gmra.mrb[0].mxu0 %v420
        %v589 = vpop.f32.mrb[0].mxu0
        %v590 = vadd.f32 0.0, %v589
        %v591 = vpop.f32.mrb[0].mxu0
        %v592 = vpop.f32.mrb[0].mxu0
        %v593 = vadd.f32 0.0, %v592
        %v594 = vpop.f32.mrb[0].mxu0
        %595 = vmatprep.mubr.bf16.mxu0 0
        %596 = vmatmul.mubr.bf16.gmra.mrb[0].mxu0 %v423
        %v597 = vpop.f32.mrb[0].mxu0
        %v598 = vadd.f32 0.0, %v597
        %v599 = vpop.f32.mrb[0].mxu0
        %v600 = vpop.f32.mrb[0].mxu0
        %v601 = vadd.f32 0.0, %v600
        %v602 = vpop.f32.mrb[0].mxu0
        %603 = vmatprep.mubr.bf16.mxu0 0
        %604 = vmatmul.mubr.bf16.gmra.mrb[0].mxu0 %v426
        %v605 = vpop.f32.mrb[0].mxu0
        %v606 = vadd.f32 0.0, %v605
        %v607 = vpop.f32.mrb[0].mxu0
        %v608 = vpop.f32.mrb[0].mxu0
        %v609 = vadd.f32 0.0, %v608
        %v610 = vpop.f32.mrb[0].mxu0
        %611 = vmatprep.mubr.bf16.mxu0 0
        %612 = vmatmul.mubr.bf16.gmra.mrb[0].mxu0 %v429
        %v613 = vpop.f32.mrb[0].mxu0
        %v614 = vadd.f32 0.0, %v613
        %v615 = vpop.f32.mrb[0].mxu0
        %v616 = vpop.f32.mrb[0].mxu0
        %v617 = vadd.f32 0.0, %v616
        %v618 = vpop.f32.mrb[0].mxu0
        %619 = vmatprep.mubr.bf16.mxu0 0
        %620 = vmatmul.mubr.bf16.gmra.mrb[0].mxu0 %v432
        %v621 = vpop.f32.mrb[0].mxu0
        %v622 = vadd.f32 0.0, %v621
        %v623 = vpop.f32.mrb[0].mxu0
        %v624 = vpop.f32.mrb[0].mxu0
        %v625 = vadd.f32 0.0, %v624
        %v626 = vpop.f32.mrb[0].mxu0
        %627 = vmatprep.mubr.bf16.mxu0 0
        %628 = vmatmul.mubr.bf16.gmra.mrb[0].mxu0 %v435
        %v629 = vpop.f32.mrb[0].mxu0
        %v630 = vadd.f32 0.0, %v629
        %v631 = vpop.f32.mrb[0].mxu0
        %v632 = vpop.f32.mrb[0].mxu0
        %v633 = vadd.f32 0.0, %v632
        %v634 = vpop.f32.mrb[0].mxu0
        %635 = vmatprep.mubr.bf16.mxu0 0
        %636 = vmatmul.mubr.bf16.gmra.mrb[0].mxu0 %v438
        %v637 = vpop.f32.mrb[0].mxu0
        %v638 = vadd.f32 0.0, %v637
        %v639 = vpop.f32.mrb[0].mxu0
        %v640 = vpop.f32.mrb[0].mxu0
        %v641 = vadd.f32 0.0, %v640
        %v642 = vpop.f32.mrb[0].mxu0
        %643 = vmatprep.mubr.bf16.mxu0 0
        %644 = vmatmul.mubr.bf16.gmra.mrb[0].mxu0 %v441
        %v645 = vpop.f32.mrb[0].mxu0
        %v646 = vadd.f32 0.0, %v645
        %v647 = vpop.f32.mrb[0].mxu0
        %v648 = vpop.f32.mrb[0].mxu0
        %v649 = vadd.f32 0.0, %v648
        %v650 = vpop.f32.mrb[0].mxu0
        %651 = vmatprep.mubr.bf16.mxu0 0
        %652 = vmatmul.mubr.bf16.gmra.mrb[0].mxu0 %v444
        %v653 = vpop.f32.mrb[0].mxu0
        %v654 = vadd.f32 0.0, %v653
        %v655 = vpop.f32.mrb[0].mxu0
        %v656 = vpop.f32.mrb[0].mxu0
        %v657 = vadd.f32 0.0, %v656
        %v658 = vpop.f32.mrb[0].mxu0
        %659 = vmatprep.mubr.bf16.mxu0 0
        %660 = vmatmul.mubr.bf16.gmra.mrb[0].mxu0 %v447
        %v661 = vpop.f32.mrb[0].mxu0
        %v662 = vadd.f32 0.0, %v661
        %v663 = vpop.f32.mrb[0].mxu0
        %v664 = vpop.f32.mrb[0].mxu0
        %v665 = vadd.f32 0.0, %v664
        %v666 = vpop.f32.mrb[0].mxu0
        %667 = vmatprep.mubr.bf16.mxu0 0
        %668 = vmatmul.mubr.bf16.gmra.mrb[0].mxu0 %v450
        %v669 = vpop.f32.mrb[0].mxu0
        %v670 = vadd.f32 0.0, %v669
        %v671 = vpop.f32.mrb[0].mxu0
        %v672 = vpop.f32.mrb[0].mxu0
        %v673 = vadd.f32 0.0, %v672
        %v674 = vpop.f32.mrb[0].mxu0
        %675 = vmatprep.mubr.bf16.mxu0 0
        %676 = vmatmul.mubr.bf16.gmra.mrb[0].mxu0 %v453
        %v677 = vpop.f32.mrb[0].mxu0
        %v678 = vadd.f32 0.0, %v677
        %v679 = vpop.f32.mrb[0].mxu0
        %v680 = vpop.f32.mrb[0].mxu0
        %v681 = vadd.f32 0.0, %v680
        %v682 = vpop.f32.mrb[0].mxu0
        %683 = vmatprep.mubr.bf16.mxu0 0
        %684 = vmatmul.mubr.bf16.gmra.mrb[0].mxu0 %v456
        %v685 = vpop.f32.mrb[0].mxu0
        %v686 = vadd.f32 0.0, %v685
        %v687 = vpop.f32.mrb[0].mxu0
        %v688 = vpop.f32.mrb[0].mxu0
        %v689 = vadd.f32 0.0, %v688
        %v690 = vpop.f32.mrb[0].mxu0
        %691 = vmatprep.mubr.bf16.mxu0 0
        %692 = vmatmul.mubr.bf16.gmra.mrb[0].mxu0 %v459
        %v693 = vpop.f32.mrb[0].mxu0
        %v694 = vadd.f32 0.0, %v693
        %v695 = vpop.f32.mrb[0].mxu0
        %v696 = vpop.f32.mrb[0].mxu0
        %v697 = vadd.f32 0.0, %v696
        %v698 = vpop.f32.mrb[0].mxu0
        %699 = vmatprep.mubr.bf16.mxu0 0
        %700 = vmatmul.mubr.bf16.gmra.mrb[0].mxu0 %v462
        %v701 = vpop.f32.mrb[0].mxu0
        %v702 = vadd.f32 0.0, %v701
        %v703 = vpop.f32.mrb[0].mxu0
        %v704 = vpop.f32.mrb[0].mxu0
        %v705 = vadd.f32 0.0, %v704
        %v706 = vpop.f32.mrb[0].mxu0
        %707 = vmatprep.mubr.bf16.mxu0 0
        %708 = vmatmul.mubr.bf16.gmra.mrb[0].mxu0 %v465
        %v709 = vpop.f32.mrb[0].mxu0
        %v710 = vadd.f32 0.0, %v709
        %v711 = vpop.f32.mrb[0].mxu0
        %v712 = vpop.f32.mrb[0].mxu0
        %v713 = vadd.f32 0.0, %v712
        %v714 = vpop.f32.mrb[0].mxu0
        %715 = vmatprep.mubr.bf16.mxu0 0
        %716 = vmatmul.mubr.bf16.gmra.mrb[0].mxu0 %v468
        %v717 = vpop.f32.mrb[0].mxu0
        %v718 = vadd.f32 0.0, %v717
        %v719 = vpop.f32.mrb[0].mxu0
        %v720 = vpop.f32.mrb[0].mxu0
        %v721 = vadd.f32 0.0, %v720
        %v722 = vpop.f32.mrb[0].mxu0
        %723 = vmatprep.mubr.bf16.mxu0 0
        %724 = vmatmul.mubr.bf16.gmra.mrb[0].mxu0 %v471
        %v725 = vpop.f32.mrb[0].mxu0
        %v726 = vadd.f32 0.0, %v725
        %v727 = vpop.f32.mrb[0].mxu0
        %v728 = vpop.f32.mrb[0].mxu0
        %v729 = vadd.f32 0.0, %v728
        %v730 = vpop.f32.mrb[0].mxu0
        %731 = vmatprep.mubr.bf16.mxu0 0
        %732 = vmatmul.mubr.bf16.gmra.mrb[0].mxu0 %v474
        %v733 = vpop.f32.mrb[0].mxu0
        %v734 = vadd.f32 0.0, %v733
        %v735 = vpop.f32.mrb[0].mxu0
        %v736 = vpop.f32.mrb[0].mxu0
        %v737 = vadd.f32 0.0, %v736
        %v738 = vpop.f32.mrb[0].mxu0
        %739 = vmatprep.mubr.bf16.mxu0 0
        %740 = vmatmul.mubr.bf16.gmra.mrb[0].mxu0 %v477
        %v741 = vpop.f32.mrb[0].mxu0
        %v742 = vadd.f32 0.0, %v741
        %v743 = vpop.f32.mrb[0].mxu0
        %v744 = vpop.f32.mrb[0].mxu0
        %v745 = vadd.f32 0.0, %v744
        %v746 = vpop.f32.mrb[0].mxu0
        %747 = vmatprep.mubr.bf16.mxu0 0
        %748 = vmatmul.mubr.bf16.gmra.mrb[0].mxu0 %v480
        %v749 = vpop.f32.mrb[0].mxu0
        %v750 = vadd.f32 0.0, %v749
        %v751 = vpop.f32.mrb[0].mxu0
        %v752 = vpop.f32.mrb[0].mxu0
        %v753 = vadd.f32 0.0, %v752
        %v754 = vpop.f32.mrb[0].mxu0
        %755 = vmatprep.mubr.bf16.mxu0 0
        %756 = vmatmul.mubr.bf16.gmra.mrb[0].mxu0 %v483
        %v757 = vpop.f32.mrb[0].mxu0
        %v758 = vadd.f32 0.0, %v757
        %v759 = vpop.f32.mrb[0].mxu0
        %v760 = vpop.f32.mrb[0].mxu0
        %v761 = vadd.f32 0.0, %v760
        %v762 = vpop.f32.mrb[0].mxu0
        %763 = vmatprep.mubr.bf16.mxu0 0
        %764 = vmatmul.mubr.bf16.gmra.mrb[0].mxu0 %v486
        %v765 = vpop.f32.mrb[0].mxu0
        %v766 = vadd.f32 0.0, %v765
        %v767 = vpop.f32.mrb[0].mxu0
        %v768 = vpop.f32.mrb[0].mxu0
        %v769 = vadd.f32 0.0, %v768
        %v770 = vpop.f32.mrb[0].mxu0
        %771 = vmatprep.mubr.bf16.mxu0 0
        %772 = vmatmul.mubr.bf16.gmra.mrb[0].mxu0 %v489
        %v773 = vpop.f32.mrb[0].mxu0
        %v774 = vadd.f32 0.0, %v773
        %v775 = vpop.f32.mrb[0].mxu0
        %v776 = vpop.f32.mrb[0].mxu0
        %v777 = vadd.f32 0.0, %v776
        %v778 = vpop.f32.mrb[0].mxu0
        %779 = vdwg.mxu0
        %v780 = vpack.c.bf16 %v529, %v526
        %v781 = vpack.c.bf16 %v537, %v534
        %v782 = vpack.c.bf16 %v545, %v542
        %v783 = vpack.c.bf16 %v553, %v550
        %v784 = vpack.c.bf16 %v561, %v558
        %v785 = vpack.c.bf16 %v569, %v566
        %v786 = vpack.c.bf16 %v577, %v574
        %v787 = vpack.c.bf16 %v585, %v582
        %v788 = vpack.c.bf16 %v593, %v590
        %v789 = vpack.c.bf16 %v601, %v598
        %v790 = vpack.c.bf16 %v609, %v606
        %v791 = vpack.c.bf16 %v617, %v614
        %v792 = vpack.c.bf16 %v625, %v622
        %v793 = vpack.c.bf16 %v633, %v630
        %v794 = vpack.c.bf16 %v641, %v638
        %v795 = vpack.c.bf16 %v649, %v646
        %v796 = vpack.c.bf16 %v657, %v654
        %v797 = vpack.c.bf16 %v665, %v662
        %v798 = vpack.c.bf16 %v673, %v670
        %v799 = vpack.c.bf16 %v681, %v678
        %v800 = vpack.c.bf16 %v689, %v686
        %v801 = vpack.c.bf16 %v697, %v694
        %v802 = vpack.c.bf16 %v705, %v702
        %v803 = vpack.c.bf16 %v713, %v710
        %v804 = vpack.c.bf16 %v721, %v718
        %v805 = vpack.c.bf16 %v729, %v726
        %v806 = vpack.c.bf16 %v737, %v734
        %v807 = vpack.c.bf16 %v745, %v742
        %v808 = vpack.c.bf16 %v753, %v750
        %v809 = vpack.c.bf16 %v761, %v758
        %v810 = vpack.c.bf16 %v769, %v766
        %v811 = vpack.c.bf16 %v777, %v774
        %v844 = vunpack.c.l.b16 %v780
        %v845 = vunpack.c.h.b16 %v780
        %v846 = vunpack.c.l.b16 %v781
        %v847 = vunpack.c.h.b16 %v781
        %v848 = vunpack.c.l.b16 %v782
        %v849 = vunpack.c.h.b16 %v782
        %v850 = vunpack.c.l.b16 %v783
        %v851 = vunpack.c.h.b16 %v783
        %v852 = vunpack.c.l.b16 %v784
        %v853 = vunpack.c.h.b16 %v784
        %v854 = vunpack.c.l.b16 %v785
        %v855 = vunpack.c.h.b16 %v785
        %v856 = vunpack.c.l.b16 %v786
        %v857 = vunpack.c.h.b16 %v786
        %v858 = vunpack.c.l.b16 %v787
        %v859 = vunpack.c.h.b16 %v787
        %v860 = vunpack.c.l.b16 %v788
        %v861 = vunpack.c.h.b16 %v788
        %v862 = vunpack.c.l.b16 %v789
        %v863 = vunpack.c.h.b16 %v789
        %v864 = vunpack.c.l.b16 %v790
        %v865 = vunpack.c.h.b16 %v790
        %v866 = vunpack.c.l.b16 %v791
        %v867 = vunpack.c.h.b16 %v791
        %v868 = vunpack.c.l.b16 %v792
        %v869 = vunpack.c.h.b16 %v792
        %v870 = vunpack.c.l.b16 %v793
        %v871 = vunpack.c.h.b16 %v793
        %v872 = vunpack.c.l.b16 %v794
        %v873 = vunpack.c.h.b16 %v794
        %v874 = vunpack.c.l.b16 %v795
        %v875 = vunpack.c.h.b16 %v795
        %v876 = vunpack.c.l.b16 %v796
        %v877 = vunpack.c.h.b16 %v796
        %v878 = vunpack.c.l.b16 %v797
        %v879 = vunpack.c.h.b16 %v797
        %v880 = vunpack.c.l.b16 %v798
        %v881 = vunpack.c.h.b16 %v798
        %v882 = vunpack.c.l.b16 %v799
        %v883 = vunpack.c.h.b16 %v799
        %v884 = vunpack.c.l.b16 %v800
        %v885 = vunpack.c.h.b16 %v800
        %v886 = vunpack.c.l.b16 %v801
        %v887 = vunpack.c.h.b16 %v801
        %v888 = vunpack.c.l.b16 %v802
        %v889 = vunpack.c.h.b16 %v802
        %v890 = vunpack.c.l.b16 %v803
        %v891 = vunpack.c.h.b16 %v803
        %v892 = vunpack.c.l.b16 %v804
        %v893 = vunpack.c.h.b16 %v804
        %v894 = vunpack.c.l.b16 %v805
        %v895 = vunpack.c.h.b16 %v805
        %v896 = vunpack.c.l.b16 %v806
        %v897 = vunpack.c.h.b16 %v806
        %v898 = vunpack.c.l.b16 %v807
        %v899 = vunpack.c.h.b16 %v807
        %v900 = vunpack.c.l.b16 %v808
        %v901 = vunpack.c.h.b16 %v808
        %v902 = vunpack.c.l.b16 %v809
        %v903 = vunpack.c.h.b16 %v809
        %v904 = vunpack.c.l.b16 %v810
        %v905 = vunpack.c.h.b16 %v810
        %v906 = vunpack.c.l.b16 %v811
        %v907 = vunpack.c.h.b16 %v811
        %v908 = vpack.c.b16 %v844, %v844
        %v909 = vpack.c.b16 %v845, %v845
        %v910 = vpack.c.b16 %v846, %v846
        %v911 = vpack.c.b16 %v847, %v847
        %v912 = vpack.c.b16 %v848, %v848
        %v913 = vpack.c.b16 %v849, %v849
        %v914 = vpack.c.b16 %v850, %v850
        %v915 = vpack.c.b16 %v851, %v851
        %v916 = vpack.c.b16 %v852, %v852
        %v917 = vpack.c.b16 %v853, %v853
        %v918 = vpack.c.b16 %v854, %v854
        %v919 = vpack.c.b16 %v855, %v855
        %v920 = vpack.c.b16 %v856, %v856
        %v921 = vpack.c.b16 %v857, %v857
        %v922 = vpack.c.b16 %v858, %v858
        %v923 = vpack.c.b16 %v859, %v859
        %v924 = vpack.c.b16 %v860, %v860
        %v925 = vpack.c.b16 %v861, %v861
        %v926 = vpack.c.b16 %v862, %v862
        %v927 = vpack.c.b16 %v863, %v863
        %v928 = vpack.c.b16 %v864, %v864
        %v929 = vpack.c.b16 %v865, %v865
        %v930 = vpack.c.b16 %v866, %v866
        %v931 = vpack.c.b16 %v867, %v867
        %v932 = vpack.c.b16 %v868, %v868
        %v933 = vpack.c.b16 %v869, %v869
        %v934 = vpack.c.b16 %v870, %v870
        %v935 = vpack.c.b16 %v871, %v871
        %v936 = vpack.c.b16 %v872, %v872
        %v937 = vpack.c.b16 %v873, %v873
        %v938 = vpack.c.b16 %v874, %v874
        %v939 = vpack.c.b16 %v875, %v875
        %v940 = vpack.c.b16 %v876, %v876
        %v941 = vpack.c.b16 %v877, %v877
        %v942 = vpack.c.b16 %v878, %v878
        %v943 = vpack.c.b16 %v879, %v879
        %v944 = vpack.c.b16 %v880, %v880
        %v945 = vpack.c.b16 %v881, %v881
        %v946 = vpack.c.b16 %v882, %v882
        %v947 = vpack.c.b16 %v883, %v883
        %v948 = vpack.c.b16 %v884, %v884
        %v949 = vpack.c.b16 %v885, %v885
        %v950 = vpack.c.b16 %v886, %v886
        %v951 = vpack.c.b16 %v887, %v887
        %v952 = vpack.c.b16 %v888, %v888
        %v953 = vpack.c.b16 %v889, %v889
        %v954 = vpack.c.b16 %v890, %v890
        %v955 = vpack.c.b16 %v891, %v891
        %v956 = vpack.c.b16 %v892, %v892
        %v957 = vpack.c.b16 %v893, %v893
        %v958 = vpack.c.b16 %v894, %v894
        %v959 = vpack.c.b16 %v895, %v895
        %v960 = vpack.c.b16 %v896, %v896
        %v961 = vpack.c.b16 %v897, %v897
        %v962 = vpack.c.b16 %v898, %v898
        %v963 = vpack.c.b16 %v899, %v899
        %v964 = vpack.c.b16 %v900, %v900
        %v965 = vpack.c.b16 %v901, %v901
        %v966 = vpack.c.b16 %v902, %v902
        %v967 = vpack.c.b16 %v903, %v903
        %v968 = vpack.c.b16 %v904, %v904
        %v969 = vpack.c.b16 %v905, %v905
        %v970 = vpack.c.b16 %v906, %v906
        %v971 = vpack.c.b16 %v907, %v907
        %1036 = vst [vmem:[%s137] sm:$0xf] %v908
        %1037 = vst [vmem:[%s137 + $0x4] sm:$0xf] %v909
        %1038 = vst [vmem:[%s137 + $0x8] sm:$0xf] %v910
        %1039 = vst [vmem:[%s137 + $0xc] sm:$0xf] %v911
        %1040 = vst [vmem:[%s137 + $0x10] sm:$0xf] %v912
        %1041 = vst [vmem:[%s137 + $0x14] sm:$0xf] %v913
        %1042 = vst [vmem:[%s137 + $0x18] sm:$0xf] %v914
        %1043 = vst [vmem:[%s137 + $0x1c] sm:$0xf] %v915
        %1044 = vst [vmem:[%s137 + $0x20] sm:$0xf] %v916
        %1045 = vst [vmem:[%s137 + $0x24] sm:$0xf] %v917
        %1046 = vst [vmem:[%s137 + $0x28] sm:$0xf] %v918
        %1047 = vst [vmem:[%s137 + $0x2c] sm:$0xf] %v919
        %1048 = vst [vmem:[%s137 + $0x30] sm:$0xf] %v920
        %1049 = vst [vmem:[%s137 + $0x34] sm:$0xf] %v921
        %1050 = vst [vmem:[%s137 + $0x38] sm:$0xf] %v922
        %1051 = vst [vmem:[%s137 + $0x3c] sm:$0xf] %v923
        %1052 = vst [vmem:[%s137 + $0x40] sm:$0xf] %v924
        %1053 = vst [vmem:[%s137 + $0x44] sm:$0xf] %v925
        %1054 = vst [vmem:[%s137 + $0x48] sm:$0xf] %v926
        %1055 = vst [vmem:[%s137 + $0x4c] sm:$0xf] %v927
        %1056 = vst [vmem:[%s137 + $0x50] sm:$0xf] %v928
        %1057 = vst [vmem:[%s137 + $0x54] sm:$0xf] %v929
        %1058 = vst [vmem:[%s137 + $0x58] sm:$0xf] %v930
        %1059 = vst [vmem:[%s137 + $0x5c] sm:$0xf] %v931
        %1060 = vst [vmem:[%s137 + $0x60] sm:$0xf] %v932
        %1061 = vst [vmem:[%s137 + $0x64] sm:$0xf] %v933
        %1062 = vst [vmem:[%s137 + $0x68] sm:$0xf] %v934
        %1063 = vst [vmem:[%s137 + $0x6c] sm:$0xf] %v935
        %1064 = vst [vmem:[%s137 + $0x70] sm:$0xf] %v936
        %1065 = vst [vmem:[%s137 + $0x74] sm:$0xf] %v937
        %1066 = vst [vmem:[%s137 + $0x78] sm:$0xf] %v938
        %1067 = vst [vmem:[%s137 + $0x7c] sm:$0xf] %v939
        %1068 = vst [vmem:[%s137 + $0x80] sm:$0xf] %v940
        %1069 = vst [vmem:[%s137 + $0x84] sm:$0xf] %v941
        %1070 = vst [vmem:[%s137 + $0x88] sm:$0xf] %v942
        %1071 = vst [vmem:[%s137 + $0x8c] sm:$0xf] %v943
        %1072 = vst [vmem:[%s137 + $0x90] sm:$0xf] %v944
        %1073 = vst [vmem:[%s137 + $0x94] sm:$0xf] %v945
        %1074 = vst [vmem:[%s137 + $0x98] sm:$0xf] %v946
        %1075 = vst [vmem:[%s137 + $0x9c] sm:$0xf] %v947
        %1076 = vst [vmem:[%s137 + $0xa0] sm:$0xf] %v948
        %1077 = vst [vmem:[%s137 + $0xa4] sm:$0xf] %v949
        %1078 = vst [vmem:[%s137 + $0xa8] sm:$0xf] %v950
        %1079 = vst [vmem:[%s137 + $0xac] sm:$0xf] %v951
        %1080 = vst [vmem:[%s137 + $0xb0] sm:$0xf] %v952
        %1081 = vst [vmem:[%s137 + $0xb4] sm:$0xf] %v953
        %1082 = vst [vmem:[%s137 + $0xb8] sm:$0xf] %v954
        %1083 = vst [vmem:[%s137 + $0xbc] sm:$0xf] %v955
        %1084 = vst [vmem:[%s137 + $0xc0] sm:$0xf] %v956
        %1085 = vst [vmem:[%s137 + $0xc4] sm:$0xf] %v957
        %1086 = vst [vmem:[%s137 + $0xc8] sm:$0xf] %v958
        %1087 = vst [vmem:[%s137 + $0xcc] sm:$0xf] %v959
        %1088 = vst [vmem:[%s137 + $0xd0] sm:$0xf] %v960
        %1089 = vst [vmem:[%s137 + $0xd4] sm:$0xf] %v961
        %1090 = vst [vmem:[%s137 + $0xd8] sm:$0xf] %v962
        %1091 = vst [vmem:[%s137 + $0xdc] sm:$0xf] %v963
        %1092 = vst [vmem:[%s137 + $0xe0] sm:$0xf] %v964
        %1093 = vst [vmem:[%s137 + $0xe4] sm:$0xf] %v965
        %1094 = vst [vmem:[%s137 + $0xe8] sm:$0xf] %v966
        %1095 = vst [vmem:[%s137 + $0xec] sm:$0xf] %v967
        %1096 = vst [vmem:[%s137 + $0xf0] sm:$0xf] %v968
        %1097 = vst [vmem:[%s137 + $0xf4] sm:$0xf] %v969
        %1098 = vst [vmem:[%s137 + $0xf8] sm:$0xf] %v970
        %1099 = vst [vmem:[%s137 + $0xfc] sm:$0xf] %v971
        %s1100 = sand.u32 %s71, 1
        %s1101 = scalar_lea.sflag [#allocation3], %s1100
        %s1102 = sand.u32 %s71, 1
        %s1103 = smul.addr %s1102, 256
        %s1104 = scalar_lea.vmem [#allocation2], %s1103
        // Predicated region
        $region29: #{tpu_custom_call.1} parent=27 // pred_check
          %p1105 = pneg %p81
        $region30: #{tpu_custom_call.1} parent=27 // pred_check_branch
          %1107 = sbr.rel (%p1105) target = $region32
        $region31: #{tpu_custom_call.1} parent=27 // pred_region
          %s1108 = smul.u32 64, %s16
          %s1110 = ssub.s32 4096, 4096
          %1111 = vsyncadd %s1101, %s1110
          %s1112 = smul.addr %s1108, 64
          %s1113 = scalar_lea.hbm %s2, %s1112
          %s1114 = sshll.u32 %s1104, 4
          %s1115 = int_to_ptr.vmem [resolvable:$true] %s1114
          %1120 = dma.vmem_to_hbm [thread:$0]  %s1115, 4096, %s1113, %s1101, 64, 64, 4
        $region32: #{tpu_custom_call.1} parent=27 // pred_fallthru
          _
      $region28: #{tpu_custom_call.1} parent=5 // pred_fallthru
        _
      %p1121 = scmp.le.s32.totalorder 2, %s11
      // Predicated region
      $region33: #{tpu_custom_call.1} parent=5 // pred_check
        %p1122 = pneg %p1121
      $region34: #{tpu_custom_call.1} parent=5 // pred_check_branch
        %1124 = sbr.rel (%p1122) target = $region36
      $region35: #{tpu_custom_call.1} parent=5 // pred_region
        %s1125 = ssub.s32 %s11, 2
        // Predicated region
        $region37: #{tpu_custom_call.1} parent=35 // pred_check
          %p1126 = pneg %p87
        $region38: #{tpu_custom_call.1} parent=35 // pred_check_branch
          %1128 = sbr.rel (%p1126) target = $region40
        $region39: #{tpu_custom_call.1} parent=35 // pred_region
          %s1129 = sand.u32 %s72, 1
          %s1130 = scalar_lea.sflag [#allocation3], %s1129
          %s1131 = sand.u32 %s72, 1
          %s1132 = smul.addr %s1131, 256
          %s1133 = scalar_lea.vmem [#allocation2], %s1132
          %1134 = dma.done %s1130, 4096
        $region40: #{tpu_custom_call.1} parent=35 // pred_fallthru
          _
      $region36: #{tpu_custom_call.1} parent=5 // pred_fallthru
        _
    $region6: #{tpu_custom_call.1} parent=1 // loop_footer
      %s15 = sadd.s32 1, %s11
    $region7: #{tpu_custom_call.1} parent=1 // loop_footer_branch
      %10 = sbr.rel target = $region3
    $region8: #{tpu_custom_call.1} parent=1 // loop_exit
      _
    %1135 = vsyncpa [#allocation3], 1
    %s1136 = scalar_lea.sflag [#allocation3], 1
    %1137 = vsyncpa %s1136, 1

</llo_original>
